<compile_context>
chip_gen: v6e
topology: v6e:2x2x1
jax: 0.10.0
libtpu: 0.0.40
codegen_flags: <defaults>
</compile_context>

<pallas_src>
import jax
import jax.numpy as jnp
from jax.experimental import pallas as pl
from jax.experimental.pallas import tpu as pltpu


def _round_up(x, m):
    return ((x + m - 1) // m) * m


def _nn_kernel(x_ref, w_ref, b_ref, out_ref):
    # TODO(synk): torch.nn.Dropout(p) in training mode is stochastic; eval-mode
    # dropout (identity) is implemented here, matching inference semantics.
    x = x_ref[...].astype(jnp.bfloat16)      # (TM, F) cast in-kernel (no host copy)
    w = w_ref[...]                           # (F, A)  bf16, 1/temperature folded in
    b = b_ref[...]                           # (1, A)  f32,  1/temperature folded in

    # Dense layer on the MXU with f32 accumulation; bias add in f32.
    logits = jnp.dot(x, w, preferred_element_type=jnp.float32) + b   # (TM, A)

    # Numerically stable softmax over assets, all in f32, exact normalization.
    m = jnp.max(logits, axis=-1, keepdims=True)
    e = jnp.exp(logits - m)
    denom = jnp.sum(e, axis=-1, keepdims=True)
    out_ref[...] = (e / denom).astype(out_ref.dtype)


def prepare_params(weight, bias, temperature):
    """One-time parameter packing (do at load time, not per forward call).

    weight: (n_assets, n_features) PyTorch layout; bias: (n_assets,);
    temperature: shape-(1,) parameter. Folds 1/temperature into both:
    softmax((x W^T + b) / T) == softmax(x (W^T / T) + b / T).
    """
    t = temperature.reshape(()).astype(jnp.float32)
    w_packed = (weight.T.astype(jnp.float32) / t).astype(jnp.bfloat16)   # (F, A)
    b_packed = (bias.astype(jnp.float32) / t).reshape(1, -1)             # (1, A)
    return w_packed, b_packed


def _choose_tile(n_samples, n_features, n_assets, x_itemsize, out_itemsize):
    # Per-core VMEM capacity; conservative fallback (v7x per-TC size) if the
    # query is unavailable (e.g. interpret mode / no TPU in the process).
    try:
        vmem_cap = int(pltpu.get_tpu_info().vmem_capacity_bytes)
    except Exception:
        vmem_cap = 64 * 1024 * 1024
    budget = (vmem_cap * 3) // 5                          # ~60%: headroom for compiler scratch
    resident = n_features * n_assets * 2 + n_assets * 4   # bf16 W + f32 bias (single-buffered)
    per_row = 2 * n_features * x_itemsize + 2 * n_assets * out_itemsize  # dbl-buffered x / out
    tm = max(8, (budget - resident) // max(per_row, 1))
    tm = max(8, min(2048, (tm // 8) * 8))
    # Keep a few grid steps when the batch allows it (v7x megacore + pipeline depth).
    tm = min(tm, max(8, _round_up(pl.cdiv(n_samples, 4), 8)))
    if n_samples < 8:
        tm = n_samples                                    # full-extent block is always legal
    working = resident + tm * per_row
    vmem_limit = int(min(vmem_cap, max(4 * 1024 * 1024, (working * 3) // 2)))
    return tm, vmem_limit


def neural_network_forward(x, w_packed, b_packed, *, block_rows=None):
    """x: (n_samples, 1, lookback, n_assets), f32 or bf16.
    w_packed: (n_features, n_assets) bf16 and b_packed: (1, n_assets) f32 from
    prepare_params(). Returns allocation weights of shape (n_samples, n_assets), f32."""
    n_samples = x.shape[0]
    n_features, n_assets = w_packed.shape

    x_flat = x.reshape(n_samples, n_features)             # free reshape, no dtype copy
    out_dtype = jnp.float32

    tm, vmem_limit = _choose_tile(
        n_samples, n_features, n_assets,
        x_flat.dtype.itemsize, jnp.dtype(out_dtype).itemsize)
    if block_rows is not None:
        tm = block_rows

    grid = (pl.cdiv(n_samples, tm),)                      # ragged last block handled by Pallas

    cost = pl.CostEstimate(
        flops=2 * n_samples * n_features * n_assets,
        transcendentals=n_samples * n_assets,
        bytes_accessed=(n_samples * n_features * x_flat.dtype.itemsize
                        + n_features * n_assets * 2 + n_assets * 4
                        + n_samples * n_assets * jnp.dtype(out_dtype).itemsize),
    )

    # TODO(synk): for very large n_features, add a K grid axis ("arbitrary", last)
    # with an f32 VMEM accumulator instead of keeping the whole (F, A) weight resident.
    return pl.pallas_call(
        _nn_kernel,
        out_shape=jax.ShapeDtypeStruct((n_samples, n_assets), out_dtype),
        grid=grid,
        in_specs=[
            pl.BlockSpec((tm, n_features), lambda i: (i, 0)),        # x tile (streamed)
            pl.BlockSpec((n_features, n_assets), lambda i: (0, 0)),  # weight (VMEM-resident)
            pl.BlockSpec((1, n_assets), lambda i: (0, 0)),           # bias (VMEM-resident)
        ],
        out_specs=pl.BlockSpec((tm, n_assets), lambda i: (i, 0)),
        compiler_params=pltpu.CompilerParams(
            dimension_semantics=("parallel",),
            vmem_limit_bytes=vmem_limit,
        ),
        cost_estimate=cost,
    )(x_flat, w_packed, b_packed)


def init_params(key, n_assets, lookback):
    """Deterministic init mimicking torch.nn.Linear default (U[-1/sqrt(fan_in), 1/sqrt(fan_in)])."""
    n_features = n_assets * lookback
    k_w, k_b = jax.random.split(key)
    bound = 1.0 / jnp.sqrt(jnp.float32(n_features))
    weight = jax.random.uniform(k_w, (n_assets, n_features), jnp.float32, -bound, bound)
    bias = jax.random.uniform(k_b, (n_assets,), jnp.float32, -bound, bound)
    temperature = jnp.ones((1,), jnp.float32)   # torch.nn.Parameter(torch.ones(1))
    return weight, bias, temperature


if __name__ == "__main__":
    key = jax.random.PRNGKey(0)
    k_x, k_p = jax.random.split(key)

    n_samples, lookback, n_assets = 8, 16, 4   # n_features = 64

    x = jax.random.normal(k_x, (n_samples, 1, lookback, n_assets), jnp.float32)
    weight, bias, temperature = init_params(k_p, n_assets, lookback)
    w_packed, b_packed = prepare_params(weight, bias, temperature)

    weights_out = neural_network_forward(x, w_packed, b_packed)
    weights_out = jax.block_until_ready(weights_out)

    # sanity: shape, exact-division softmax rows sum to ~1 (f32 rounding only)
    assert weights_out.shape == (n_samples, n_assets)
    assert jnp.allclose(jnp.sum(weights_out, axis=-1), 1.0, atol=1e-4)

    # cross-check vs. pure-JAX f32 reference (bf16 weights in kernel -> modest tolerance)
    x_flat = x.reshape(n_samples, -1)
    ref = jax.nn.softmax((x_flat @ weight.T + bias) / temperature[0], axis=-1)
    assert jnp.allclose(weights_out, ref, atol=2e-2)

    print("KERNEL_OK")
</pallas_src>

<mosaic_0001>
module attributes {stable_mosaic.version = 11 : i64} {
  func.func @_nn_kernel(%arg0: i32, %arg1: memref<8x64xf32, #tpu.memory_space<vmem>>, %arg2: memref<64x4xbf16, #tpu.memory_space<vmem>>, %arg3: memref<1x4xf32, #tpu.memory_space<vmem>>, %arg4: memref<8x4xf32, #tpu.memory_space<vmem>>) attributes {dimension_semantics = [#tpu.dimension_semantics<parallel>], iteration_bounds = array<i64: 1>, scalar_prefetch = 0 : i64, scratch_operands = 0 : i64, tpu.core_type = #tpu.core_type<tc>, window_params = [{transform_indices = @transform_0, window_bounds = array<i64: 8, 64>}, {pipeline_mode = #tpu.pipeline_mode<synchronous>, transform_indices = @transform_1, window_bounds = array<i64: 64, 4>}, {pipeline_mode = #tpu.pipeline_mode<synchronous>, transform_indices = @transform_2, window_bounds = array<i64: 1, 4>}, {transform_indices = @transform_3, window_bounds = array<i64: 8, 4>}]} {
    %c0 = arith.constant 0 : index
    %c0_0 = arith.constant 0 : index
    %0 = vector.load %arg1[%c0, %c0_0] : memref<8x64xf32, #tpu.memory_space<vmem>>, vector<8x64xf32>
    %1 = arith.truncf %0 : vector<8x64xf32> to vector<8x64xbf16>
    %c0_1 = arith.constant 0 : index
    %c0_2 = arith.constant 0 : index
    %2 = vector.load %arg2[%c0_1, %c0_2] : memref<64x4xbf16, #tpu.memory_space<vmem>>, vector<64x4xbf16>
    %c0_3 = arith.constant 0 : index
    %c0_4 = arith.constant 0 : index
    %3 = vector.load %arg3[%c0_3, %c0_4] : memref<1x4xf32, #tpu.memory_space<vmem>>, vector<1x4xf32>
    %cst = arith.constant dense<0.000000e+00> : vector<8x4xf32>
    %4 = tpu.matmul %1, %2, %cst {dimension_numbers = #tpu.dot_dimension_numbers<[1], [0], [0], [1], [0, 0, 1, 1], [], []>} : vector<8x64xbf16>, vector<64x4xbf16>, vector<8x4xf32> -> vector<8x4xf32>
    %5 = vector.broadcast %3 : vector<1x4xf32> to vector<8x4xf32>
    %6 = arith.addf %4, %5 : vector<8x4xf32>
    %cst_5 = arith.constant dense<0xFF800000> : vector<8xf32>
    %7 = vector.multi_reduction <maximumf>, %6, %cst_5 [1] : vector<8x4xf32> to vector<8xf32>
    %8 = vector.shape_cast %7 : vector<8xf32> to vector<8x1xf32>
    %9 = vector.broadcast %8 : vector<8x1xf32> to vector<8x4xf32>
    %10 = arith.subf %6, %9 : vector<8x4xf32>
    %11 = math.exp %10 : vector<8x4xf32>
    %cst_6 = arith.constant dense<0.000000e+00> : vector<8xf32>
    %12 = vector.multi_reduction <add>, %11, %cst_6 [1] : vector<8x4xf32> to vector<8xf32>
    %13 = vector.shape_cast %12 : vector<8xf32> to vector<8x1xf32>
    %14 = vector.broadcast %13 : vector<8x1xf32> to vector<8x4xf32>
    %15 = arith.divf %11, %14 : vector<8x4xf32>
    %c0_7 = arith.constant 0 : index
    %c0_8 = arith.constant 0 : index
    %16 = vector.load %arg4[%c0_7, %c0_8] : memref<8x4xf32, #tpu.memory_space<vmem>>, vector<8x4xf32>
    tpu.vector_store %arg4[%c0_7, %c0_8], %15 {strides = array<i32>} : memref<8x4xf32, #tpu.memory_space<vmem>>, vector<8x4xf32>,
    return
  }
  func.func @transform_0(%arg0: i32) -> (i32, i32) {
    %c0_i32 = arith.constant 0 : i32
    %c0_i32_0 = arith.constant 0 : i32
    return %arg0, %c0_i32 : i32, i32
  }
  func.func @transform_1(%arg0: i32) -> (i32, i32) {
    %c0_i32 = arith.constant 0 : i32
    %c0_i32_0 = arith.constant 0 : i32
    %c0_i32_1 = arith.constant 0 : i32
    return %c0_i32, %c0_i32_0 : i32, i32
  }
  func.func @transform_2(%arg0: i32) -> (i32, i32) {
    %c0_i32 = arith.constant 0 : i32
    %c0_i32_0 = arith.constant 0 : i32
    %c0_i32_1 = arith.constant 0 : i32
    return %c0_i32, %c0_i32_0 : i32, i32
  }
  func.func @transform_3(%arg0: i32) -> (i32, i32) {
    %c0_i32 = arith.constant 0 : i32
    %c0_i32_0 = arith.constant 0 : i32
    return %arg0, %c0_i32 : i32, i32
  }
}

</mosaic_0001>

<llo_original>
// kernel: tpu_custom_call.1
$region0: #{tpu_custom_call.1}
  #allocation0 [shape = 'u32[]', space=smem, size = 0x4, offset = 0x4, fixed_abs, tag = 'smem constant byte address 0x4 - core index']
  #allocation1 [shape = 'u32[144,128]{1,0:T(1,128)}', space=vmem, size = 0x12000, scoped, tag = 'internal scratch']
  %s0 = inlined_call_operand.vmem [shape: f32[8,64], index: 0, kind: input, shape index: {}]
  %s1 = inlined_call_operand.vmem [shape: bf16[64,4], index: 1, kind: input, shape index: {}]
  %s2 = inlined_call_operand.vmem [shape: f32[1,4], index: 2, kind: input, shape index: {}]
  %s3 = inlined_call_operand.vmem [shape: f32[8,4], index: 3, kind: output, shape index: {}]
  %s4 = sld [smem:[#allocation0]]
  $region22: #{tpu_custom_call.1} parent=0
    _
  %s6 = ssub.s32 1, %s4
  %s7 = scalar_select 0, %s6, %s4
  // Predicated region
  $region2: #{tpu_custom_call.1} parent=0 // pred_check
    _
  $region3: #{tpu_custom_call.1} parent=0 // pred_check_branch
    %9 = sbr.rel (0) target = $region5
  $region4: #{tpu_custom_call.1} parent=0 // pred_region
    _
  $region5: #{tpu_custom_call.1} parent=0 // pred_fallthru
    _
  // Predicated region
  $region6: #{tpu_custom_call.1} parent=0 // pred_check
    _
  $region7: #{tpu_custom_call.1} parent=0 // pred_check_branch
    %11 = sbr.rel (0) target = $region9
  $region8: #{tpu_custom_call.1} parent=0 // pred_region
    _
  $region9: #{tpu_custom_call.1} parent=0 // pred_fallthru
    _
  // Predicated region
  $region10: #{tpu_custom_call.1} parent=0 // pred_check
    _
  $region11: #{tpu_custom_call.1} parent=0 // pred_check_branch
    %13 = sbr.rel (0) target = $region13
  $region12: #{tpu_custom_call.1} parent=0 // pred_region
    _
  $region13: #{tpu_custom_call.1} parent=0 // pred_fallthru
    _
  %v15 = vld [vmem:[%s0] sm:$0xff]
  %v16 = vpack.c.bf16 %v15, %v15
  %v17 = vld [vmem:[%s1] sm:$0xf]
  %v18 = vld [vmem:[%s1 + $0x4] sm:$0xf]
  %v19 = vld [vmem:[%s1 + $0x8] sm:$0xf]
  %v20 = vld [vmem:[%s1 + $0xc] sm:$0xf]
  %v21 = vld [vmem:[%s1 + $0x10] sm:$0xf]
  %v22 = vld [vmem:[%s1 + $0x14] sm:$0xf]
  %v23 = vld [vmem:[%s1 + $0x18] sm:$0xf]
  %v24 = vld [vmem:[%s1 + $0x1c] sm:$0xf]
  %v25 = vld [vmem:[%s2] sm:$0x1]
  %v27 = vlaneseq
  %v28 = vshrl.u32 %v27, 7
  %v29 = vsub.s32 0, %v28
  %v30 = vrot.slane %v25, %v29
  %v40 = vunpack.c.l.b16 %v17
  %v41 = vunpack.c.l.b16 %v18
  %v42 = vunpack.c.l.b16 %v19
  %v43 = vunpack.c.l.b16 %v20
  %v44 = vunpack.c.l.b16 %v21
  %v45 = vunpack.c.l.b16 %v22
  %v46 = vunpack.c.l.b16 %v23
  %v47 = vunpack.c.l.b16 %v24
  %v48 = vpack.c.b16 %v41, %v40
  %v49 = vpack.c.b16 %v43, %v42
  %v50 = vpack.c.b16 %v45, %v44
  %v51 = vpack.c.b16 %v47, %v46
  %vm56 = vcmask 523264
  %v58 = vsel %vm56, %v16, 0
  %60 = vmatprep.subr.bf16.mxu0 0
  %61 = vmatpush1.bf16.msra.mxu0 0
  %62 = vmatprep.subr.bf16.mxu0 0
  %63 = vmatpush1.bf16.msra.mxu0 0
  %64 = vmatprep.subr.bf16.mxu0 0
  %65 = vmatpush1.bf16.msra.mxu0 0
  %66 = vmatprep.subr.bf16.mxu0 0
  %67 = vmatpush1.bf16.msra.mxu0 0
  %68 = vmatprep.subr.bf16.mxu0 0
  %69 = vmatpush1.bf16.msra.mxu0 %v51
  %70 = vmatprep.subr.bf16.mxu0 0
  %71 = vmatpush1.bf16.msra.mxu0 %v50
  %72 = vmatprep.subr.bf16.mxu0 0
  %73 = vmatpush1.bf16.msra.mxu0 %v49
  %74 = vmatprep.subr.bf16.mxu0 0
  %75 = vmatpush1.bf16.msra.mxu0 %v48
  %76 = vmatprep.subr.bf16.mxu0 0
  %77 = vmatpush2.bf16.msra.mxu0 0
  %78 = vmatprep.subr.bf16.mxu0 0
  %79 = vmatpush2.bf16.msra.mxu0 0
  %80 = vmatprep.subr.bf16.mxu0 0
  %81 = vmatpush2.bf16.msra.mxu0 0
  %82 = vmatprep.subr.bf16.mxu0 0
  %83 = vmatpush2.bf16.msra.mxu0 0
  %84 = vmatprep.subr.bf16.mxu0 0
  %85 = vmatpush2.bf16.msra.mxu0 0
  %86 = vmatprep.subr.bf16.mxu0 0
  %87 = vmatpush2.bf16.msra.mxu0 0
  %88 = vmatprep.subr.bf16.mxu0 0
  %89 = vmatpush2.bf16.msra.mxu0 0
  %90 = vmatprep.subr.bf16.mxu0 0
  %91 = vmatpush2.bf16.msra.mxu0 0
  %92 = vmatprep.mubr.bf16.mxu0 0
  %93 = vmatmul.mubr.bf16.gmra.mxu0 %v58
  %v94 = vpop.f32.mrf.mxu0
  %v95 = vadd.f32 %v30, %v94
  %v96 = vpop.f32.mrf.mxu0
  %v97 = vpop.f32.mrf.mxu0
  %v98 = vpop.f32.mrf.mxu0
  %99 = vdwg.mxu0
  %vm100 = vcmask 31744
  %v101 = vsel %vm100, %v95, -inf
  %102 = vmax.xlane.f32.xlu0 %v101
  %v103 = vpop.xlane.xlu0 %102
  %v104 = vsub.f32 %v95, %v103
  %v105 = vmul.f32 %v104, 1.442695
  %v106 = vpow.pop %v105
  %v107 = vsel %vm100, %v106, 0.0
  %108 = vadd.xlane.f32.xlu0 %v107
  %v109 = vpop.xlane.xlu0 %108
  %v110 = vrcp.pop %v109
  %v111 = vmul.f32 %v106, %v110
  %112 = vst.msk [vmem:[%s3] sm:$0xff] %vm100, %v111
  // Predicated region
  $region14: #{tpu_custom_call.1} parent=0 // pred_check
    _
  $region15: #{tpu_custom_call.1} parent=0 // pred_check_branch
    %114 = sbr.rel (0) target = $region17
  $region16: #{tpu_custom_call.1} parent=0 // pred_region
    _
  $region17: #{tpu_custom_call.1} parent=0 // pred_fallthru
    _
  // Predicated region
  $region18: #{tpu_custom_call.1} parent=0 // pred_check
    _
  $region19: #{tpu_custom_call.1} parent=0 // pred_check_branch
    %116 = sbr.rel (0) target = $region21
  $region20: #{tpu_custom_call.1} parent=0 // pred_region
    _
  $region21: #{tpu_custom_call.1} parent=0 // pred_fallthru
    _

</llo_original>
